<compile_context>
chip_gen: v6e
topology: v6e:2x2x1
jax: 0.10.0
libtpu: 0.0.40
codegen_flags: <defaults>
</compile_context>

<pallas_src>
import functools

import jax
import jax.numpy as jnp
from jax.experimental import pallas as pl
from jax.experimental.pallas import tpu as pltpu


def _noisy_ce_kernel(logits_ref, targets_ref, out_ref, *, p, n, c, tile_n):
    logits = logits_ref[...].astype(jnp.float32)                 # (TILE_N, C) f32
    tgt = targets_ref[...]                                        # (TILE_N, 1) i32

    # Numerically-stable per-row cross entropy, reusing `shifted` for both the
    # exp pass and the fused one-hot gather:
    #   ce_i = log(sum_j exp(logits_ij - m_i)) - (logits_i[t_i] - m_i)
    m = jnp.max(logits, axis=1, keepdims=True)                    # (TILE_N, 1)
    shifted = logits - m                                           # (TILE_N, C)
    sum_exp = jnp.sum(jnp.exp(shifted), axis=1, keepdims=True)     # (TILE_N, 1)

    # Fused "one-hot gather": exactly one column matches an in-range target.
    col = jax.lax.broadcasted_iota(jnp.int32, (tile_n, c), 1)      # (TILE_N, C)
    picked = jnp.sum(jnp.where(col == tgt, shifted, 0.0),
                     axis=1, keepdims=True)                        # logits[t] - m
    losses = jnp.log(sum_exp) - picked                             # (TILE_N, 1)

    # one_hot(target, C).sum(dim=1) == 1.0 for any in-range target (PyTorch
    # raises otherwise), so avoid a second full (N, C) reduction.
    in_range = jnp.logical_and(tgt >= 0, tgt < c).astype(jnp.float32)
    weights = (1.0 - p) + p * (1.0 - in_range)                     # (TILE_N, 1)
    w_losses = losses * weights                                    # (TILE_N, 1)

    if n % tile_n != 0:
        # Select-mask (NOT multiply) so NaN/Inf produced from out-of-bounds
        # block reads in the final partial block cannot contaminate the sum.
        row = pl.program_id(0) * tile_n + jax.lax.broadcasted_iota(
            jnp.int32, (tile_n, 1), 0)
        w_losses = jnp.where(row < n, w_losses, 0.0)

    # One lane-aligned partial sum per grid step (splat across 128 lanes; the
    # wrapper reads lane 0).  Keeps the grid axis fully parallel (no serial
    # accumulator) and makes output HBM traffic negligible.
    out_ref[...] = jnp.full((1, 1, 128), jnp.sum(w_losses), dtype=jnp.float32)


def _vmem_capacity_bytes():
    try:
        info = pltpu.get_tpu_info()
        return int(getattr(info, "vmem_capacity_bytes", 128 * 1024 * 1024))
    except Exception:
        return 128 * 1024 * 1024


def _pick_tile_n(n, c, vmem_cap_bytes):
    """Largest multiple-of-8 row tile whose *f32* working set fits the budget."""
    # Budget the f32 working set (kernel upcasts bf16), smaller blocks on
    # 64 MiB-VMEM parts (v7x) than on 128 MiB parts (v5e/v6e).
    target_f32_block = (4 << 20) if vmem_cap_bytes <= (64 << 20) else (8 << 20)
    rows = target_f32_block // max(1, c * 4)
    rows = max(8, (rows // 8) * 8)
    rows = min(rows, 2048)
    if n >= 16:
        # Guarantee >= 2 grid steps: megacore sharding on v7x + DMA overlap.
        half = ((pl.cdiv(n, 2) + 7) // 8) * 8
        rows = min(rows, half)
    if rows >= n:
        rows = n                      # full-dim block is always layout-legal
    return rows


def noisy_cross_entropy_loss(logits, targets, p_noisy, *, tile_n=None):
    """logits: (N, C) f32/bf16, targets: (N,) int -> scalar f32 weighted-CE mean."""
    n, c = logits.shape
    targets2d = targets.astype(jnp.int32).reshape(n, 1)
    vmem_cap = _vmem_capacity_bytes()
    if tile_n is None:
        tile_n = _pick_tile_n(n, c, vmem_cap)
    num_blocks = pl.cdiv(n, tile_n)

    in_itemsize = jnp.dtype(logits.dtype).itemsize
    in_block = tile_n * c * in_itemsize           # double-buffered by Pallas
    f32_block = tile_n * c * 4                    # in-kernel f32 temporaries
    tgt_block = tile_n * 128 * 4                  # padded (TILE_N, 1) column
    vmem_need = 2 * in_block + 3 * f32_block + 2 * tgt_block + (2 << 20)
    vmem_limit = max(int(vmem_need), 16 << 20)

    kernel = functools.partial(
        _noisy_ce_kernel, p=float(p_noisy), n=n, c=c, tile_n=tile_n)

    partials = pl.pallas_call(
        kernel,
        out_shape=jax.ShapeDtypeStruct((num_blocks, 1, 128), jnp.float32),
        grid=(num_blocks,),
        in_specs=[
            pl.BlockSpec((tile_n, c), lambda i: (i, 0)),
            pl.BlockSpec((tile_n, 1), lambda i: (i, 0)),
        ],
        out_specs=pl.BlockSpec((1, 1, 128), lambda i: (i, 0, 0)),
        compiler_params=pltpu.CompilerParams(
            dimension_semantics=("parallel",),
            vmem_limit_bytes=vmem_limit,
        ),
        cost_estimate=pl.CostEstimate(
            flops=int(6 * n * c),
            transcendentals=int(n * c),
            bytes_accessed=int(n * c * in_itemsize + n * 4 + num_blocks * 512),
        ),
    )(logits, targets2d)

    # Tiny final reduction + divide-by-N in the wrapper keeps the grid parallel.
    return jnp.sum(partials[:, 0, 0]) / jnp.float32(n)


def _reference(logits, targets, p):
    logp = jax.nn.log_softmax(logits.astype(jnp.float32), axis=1)
    ce = -jnp.take_along_axis(logp, targets[:, None], axis=1)[:, 0]
    oh_sum = jnp.sum(
        jax.nn.one_hot(targets, logits.shape[1], dtype=jnp.float32), axis=1)
    w = (1.0 - p) + p * (1.0 - oh_sum)
    return jnp.mean(ce * w)


if __name__ == "__main__":
    key = jax.random.PRNGKey(0)

    # Case 1: small shapes matching the module's forward (single block).
    k1, k2 = jax.random.split(key)
    N, C, P = 8, 32, 0.2
    logits = jax.random.normal(k1, (N, C), dtype=jnp.float32)
    targets = jax.random.randint(k2, (N,), 0, C, dtype=jnp.int32)
    loss = jax.block_until_ready(noisy_cross_entropy_loss(logits, targets, P))
    ref = _reference(logits, targets, P)
    assert jnp.allclose(loss, ref, atol=1e-5, rtol=1e-4), (loss, ref)

    # Case 2: explicit small tile -> multiple grid steps + partial last block.
    k3, k4 = jax.random.split(k1)
    N2, C2, P2 = 300, 160, 0.3
    logits2 = jax.random.normal(k3, (N2, C2), dtype=jnp.float32)
    targets2 = jax.random.randint(k4, (N2,), 0, C2, dtype=jnp.int32)
    loss2 = jax.block_until_ready(
        noisy_cross_entropy_loss(logits2, targets2, P2, tile_n=64))
    ref2 = _reference(logits2, targets2, P2)
    assert jnp.allclose(loss2, ref2, atol=1e-5, rtol=1e-4), (loss2, ref2)

    # Case 3: default heuristic tiling (exercises the >=2-step grid guarantee).
    loss3 = jax.block_until_ready(
        noisy_cross_entropy_loss(logits2, targets2, P2))
    assert jnp.allclose(loss3, ref2, atol=1e-5, rtol=1e-4), (loss3, ref2)

    print("KERNEL_OK")
</pallas_src>

<mosaic_0001>
module attributes {stable_mosaic.version = 11 : i64} {
  func.func @_noisy_ce_kernel(%arg0: i32, %arg1: memref<8x32xf32, #tpu.memory_space<vmem>>, %arg2: memref<8x1xi32, #tpu.memory_space<vmem>>, %arg3: memref<1x1x128xf32, #tpu.memory_space<vmem>>) attributes {dimension_semantics = [#tpu.dimension_semantics<parallel>], iteration_bounds = array<i64: 1>, scalar_prefetch = 0 : i64, scratch_operands = 0 : i64, tpu.core_type = #tpu.core_type<tc>, window_params = [{transform_indices = @transform_0, window_bounds = array<i64: 8, 32>}, {transform_indices = @transform_1, window_bounds = array<i64: 8, 1>}, {transform_indices = @transform_2, window_bounds = array<i64: 1, 1, 128>}]} {
    %c0 = arith.constant 0 : index
    %c0_0 = arith.constant 0 : index
    %0 = vector.load %arg1[%c0, %c0_0] : memref<8x32xf32, #tpu.memory_space<vmem>>, vector<8x32xf32>
    %c0_1 = arith.constant 0 : index
    %c0_2 = arith.constant 0 : index
    %1 = vector.load %arg2[%c0_1, %c0_2] : memref<8x1xi32, #tpu.memory_space<vmem>>, vector<8x1xi32>
    %cst = arith.constant dense<0xFF800000> : vector<8xf32>
    %2 = vector.multi_reduction <maximumf>, %0, %cst [1] : vector<8x32xf32> to vector<8xf32>
    %3 = vector.shape_cast %2 : vector<8xf32> to vector<8x1xf32>
    %4 = vector.broadcast %3 : vector<8x1xf32> to vector<8x32xf32>
    %5 = arith.subf %0, %4 : vector<8x32xf32>
    %6 = math.exp %5 : vector<8x32xf32>
    %cst_3 = arith.constant dense<0.000000e+00> : vector<8xf32>
    %7 = vector.multi_reduction <add>, %6, %cst_3 [1] : vector<8x32xf32> to vector<8xf32>
    %8 = vector.shape_cast %7 : vector<8xf32> to vector<8x1xf32>
    %9 = tpu.iota {dimensions = array<i32: 1>} : vector<8x32xi32>
    %10 = vector.broadcast %1 : vector<8x1xi32> to vector<8x32xi32>
    %11 = arith.cmpi eq, %9, %10 : vector<8x32xi32>
    %cst_4 = arith.constant 0.000000e+00 : f32
    %12 = vector.broadcast %cst_4 : f32 to vector<8x32xf32>
    %13 = arith.select %11, %5, %12 : vector<8x32xi1>, vector<8x32xf32>
    %cst_5 = arith.constant dense<0.000000e+00> : vector<8xf32>
    %14 = vector.multi_reduction <add>, %13, %cst_5 [1] : vector<8x32xf32> to vector<8xf32>
    %15 = vector.shape_cast %14 : vector<8xf32> to vector<8x1xf32>
    %16 = math.log %8 : vector<8x1xf32>
    %17 = arith.subf %16, %15 : vector<8x1xf32>
    %c0_i32 = arith.constant 0 : i32
    %18 = vector.broadcast %c0_i32 : i32 to vector<8x1xi32>
    %19 = arith.cmpi sge, %1, %18 : vector<8x1xi32>
    %c32_i32 = arith.constant 32 : i32
    %20 = vector.broadcast %c32_i32 : i32 to vector<8x1xi32>
    %21 = arith.cmpi slt, %1, %20 : vector<8x1xi32>
    %22 = arith.andi %19, %21 : vector<8x1xi1>
    %23 = arith.extui %22 : vector<8x1xi1> to vector<8x1xi32>
    %24 = arith.sitofp %23 : vector<8x1xi32> to vector<8x1xf32>
    %cst_6 = arith.constant 1.000000e+00 : f32
    %25 = vector.broadcast %cst_6 : f32 to vector<8x1xf32>
    %26 = arith.subf %25, %24 : vector<8x1xf32>
    %cst_7 = arith.constant 2.000000e-01 : f32
    %27 = vector.broadcast %cst_7 : f32 to vector<8x1xf32>
    %28 = arith.mulf %27, %26 : vector<8x1xf32>
    %cst_8 = arith.constant 8.000000e-01 : f32
    %29 = vector.broadcast %cst_8 : f32 to vector<8x1xf32>
    %30 = arith.addf %29, %28 : vector<8x1xf32>
    %31 = arith.mulf %17, %30 : vector<8x1xf32>
    %32 = vector.shape_cast %31 : vector<8x1xf32> to vector<1x8x1xf32>
    %cst_9 = arith.constant dense<0.000000e+00> : vector<1xf32>
    %33 = vector.multi_reduction <add>, %32, %cst_9 [1, 2] : vector<1x8x1xf32> to vector<1xf32>
    %34 = vector.shape_cast %33 : vector<1xf32> to vector<1x1x1xf32>
    %35 = vector.extract %34[0, 0, 0] : f32 from vector<1x1x1xf32>
    %36 = vector.broadcast %35 : f32 to vector<1x1x128xf32>
    %c0_10 = arith.constant 0 : index
    %c0_11 = arith.constant 0 : index
    %c0_12 = arith.constant 0 : index
    %37 = vector.load %arg3[%c0_10, %c0_11, %c0_12] : memref<1x1x128xf32, #tpu.memory_space<vmem>>, vector<1x1x128xf32>
    tpu.vector_store %arg3[%c0_10, %c0_11, %c0_12], %36 {strides = array<i32>} : memref<1x1x128xf32, #tpu.memory_space<vmem>>, vector<1x1x128xf32>,
    return
  }
  func.func @transform_0(%arg0: i32) -> (i32, i32) {
    %c0_i32 = arith.constant 0 : i32
    %c0_i32_0 = arith.constant 0 : i32
    return %arg0, %c0_i32 : i32, i32
  }
  func.func @transform_1(%arg0: i32) -> (i32, i32) {
    %c0_i32 = arith.constant 0 : i32
    %c0_i32_0 = arith.constant 0 : i32
    return %arg0, %c0_i32 : i32, i32
  }
  func.func @transform_2(%arg0: i32) -> (i32, i32, i32) {
    %c0_i32 = arith.constant 0 : i32
    %c0_i32_0 = arith.constant 0 : i32
    %c0_i32_1 = arith.constant 0 : i32
    return %arg0, %c0_i32, %c0_i32_0 : i32, i32, i32
  }
}

</mosaic_0001>

<llo_original>
// kernel: tpu_custom_call.1
$region0: #{tpu_custom_call.1}
  #allocation0 [shape = 'u32[]', space=smem, size = 0x4, offset = 0x4, fixed_abs, tag = 'smem constant byte address 0x4 - core index']
  #allocation1 [shape = 'u32[144,128]{1,0:T(1,128)}', space=vmem, size = 0x12000, scoped, tag = 'internal scratch']
  %s0 = inlined_call_operand.vmem [shape: f32[8,32], index: 0, kind: input, shape index: {}]
  %s1 = inlined_call_operand.vmem [shape: s32[8,1], index: 1, kind: input, shape index: {}]
  %s2 = inlined_call_operand.hbm [shape: f32[1,1,128], index: 2, kind: output, shape index: {}]
  %s3 = sld [smem:[#allocation0]]
  $region18: #{tpu_custom_call.1} parent=0
    _
  %s5 = ssub.s32 1, %s3
  %s6 = scalar_select 0, %s5, %s3
  $region1: #{tpu_custom_call.1} parent=0
    #allocation2 [shape = 'u8[512]{0}', space=vmem, size = 0x400, scoped, tag = 'output window, operand 0, single buffered']
    #allocation3 [shape = 's32[1]{0}', space=sflag, size = 0x4, scoped, tag = 'scoped memory for tpu_custom_call.1']
    %7 = vsyncpa [#allocation3], 0
    // Predicated region
    $region2: #{tpu_custom_call.1} parent=1 // pred_check
      _
    $region3: #{tpu_custom_call.1} parent=1 // pred_check_branch
      %9 = sbr.rel (0) target = $region5
    $region4: #{tpu_custom_call.1} parent=1 // pred_region
      _
    $region5: #{tpu_custom_call.1} parent=1 // pred_fallthru
      _
    // Predicated region
    $region6: #{tpu_custom_call.1} parent=1 // pred_check
      _
    $region7: #{tpu_custom_call.1} parent=1 // pred_check_branch
      %11 = sbr.rel (0) target = $region9
    $region8: #{tpu_custom_call.1} parent=1 // pred_region
      _
    $region9: #{tpu_custom_call.1} parent=1 // pred_fallthru
      _
    %v12 = vld [vmem:[%s0] sm:$0xff]
    %v13 = vld [vmem:[%s1] sm:$0xff]
    %vm14 = vcmask 261120
    %v15 = vsel %vm14, %v12, -inf
    %16 = vmax.xlane.f32.xlu0 %v15
    %v17 = vpop.xlane.xlu0 %16
    %v18 = vsub.f32 %v12, %v17
    %v19 = vmul.f32 %v18, 1.442695
    %v20 = vpow.pop %v19
    %v21 = vsel %vm14, %v20, 0.0
    %22 = vadd.xlane.f32.xlu0 %v21
    %v23 = vpop.xlane.xlu0 %22
    %v24 = vlaneseq
    %v25 = vand.u32 %v24, 127
    %26 = vset.pattern.permute.xlu0 0
    %27 = vperm.xlu0 %26, %v13
    %v28 = vpop.permute.xlu0 %27
    %vm29 = vcmp.eq.s32.totalorder %v25, %v28
    %v30 = vsel %vm29, %v18, 0.0
    %v31 = vsel %vm14, %v30, 0.0
    %32 = vadd.xlane.f32.xlu0 %v31
    %v33 = vpop.xlane.xlu0 %32
    %v34 = vlog2.pop %v23
    %v35 = vmul.f32 %v34, 0.6931472
    %v36 = vsub.f32 %v35, %v33
    %vm37 = vcmp.ge.s32.totalorder %v13, 0
    %vm38 = vcmp.lt.s32.totalorder %v13, 32
    %vm39 = vmand %vm37, %vm38
    %v40 = vsel %vm39, 1, 0
    %v41 = vcvt.s32.f32 %v40
    %v42 = vsub.f32 1.0, %v41
    %v43 = vmul.f32 %v42, 0.2
    %v44 = vadd.f32 %v43, 0.8
    %v45 = vmul.f32 %v36, %v44
    %vm46 = vcmask 7168
    %v47 = vsel %vm46, %v45, 0.0
    %48 = vadd.xlane.f32.xlu0 %v47
    %v49 = vpop.xlane.xlu0 %48
    %v50 = vrot.slane %v49, 4
    %v51 = vadd.f32 %v49, %v50
    %v52 = vrot.slane %v51, 2
    %v53 = vadd.f32 %v51, %v52
    %v54 = vrot.slane %v53, 1
    %v55 = vadd.f32 %v53, %v54
    %s56 = vtos %v55
    %v57 = vstv %s56
    %58 = vst [vmem:[#allocation2] sm:$0x1] %v57
    // Predicated region
    $region10: #{tpu_custom_call.1} parent=1 // pred_check
      _
    $region11: #{tpu_custom_call.1} parent=1 // pred_check_branch
      %60 = sbr.rel (0) target = $region13
    $region12: #{tpu_custom_call.1} parent=1 // pred_region
      %s62 = ssub.s32 16, 16
      %63 = vsyncadd [#allocation3], %s62
      %s65 = sshll.u32 [#allocation2], 4
      %s66 = int_to_ptr.vmem [resolvable:$true] %s65
      %68 = dma.vmem_to_hbm [thread:$0]  %s66, 16, %s2, [#allocation3]
    $region13: #{tpu_custom_call.1} parent=1 // pred_fallthru
      _
    // Predicated region
    $region14: #{tpu_custom_call.1} parent=1 // pred_check
      _
    $region15: #{tpu_custom_call.1} parent=1 // pred_check_branch
      %70 = sbr.rel (0) target = $region17
    $region16: #{tpu_custom_call.1} parent=1 // pred_region
      %71 = dma.done [#allocation3], 16
    $region17: #{tpu_custom_call.1} parent=1 // pred_fallthru
      _
    %72 = vsyncpa [#allocation3], 1

</llo_original>
